<compile_context>
chip_gen: v7x
topology: tpu7x:2x2x1
jax: 0.10.0
libtpu: 0.0.40
codegen_flags: <defaults>
</compile_context>

<pallas_src>
import jax
import jax.numpy as jnp
from jax.experimental import pallas as pl
from jax.experimental.pallas import tpu as pltpu


def _mixer_kernel(x_ref, w1_ref, b1_ref, w2_ref, b2_ref,
                  lns_w_ref, lns_b_ref, lnh_w_ref, lnh_b_ref, o_ref):
    eps = 1e-5
    x = x_ref[...]                                    # (rows, S) f32, rows = Bt*E

    # LayerNorm over stocks: lane (last-dim) reduction per (b, e) row.
    mu = jnp.mean(x, axis=-1, keepdims=True)
    var = jnp.mean((x - mu) ** 2, axis=-1, keepdims=True)
    xn = (x - mu) * jax.lax.rsqrt(var + eps)
    xn = xn * lns_w_ref[...] + lns_b_ref[...]         # (1,S) row broadcast

    # dense1: (rows,S)@(S,H) -> (rows,H); bf16 operands, f32 MXU accumulation.
    h = jnp.dot(xn.astype(jnp.bfloat16), w1_ref[...],
                preferred_element_type=jnp.float32) + b1_ref[...]
    # Hardswish with the 1/6 folded into w2: h * relu6(h + 3).
    h = h * jnp.clip(h + 3.0, 0.0, 6.0)

    # dense2: (rows,H)@(H,S) -> (rows,S); already the (flattened) output layout.
    z = jnp.dot(h.astype(jnp.bfloat16), w2_ref[...],
                preferred_element_type=jnp.float32) + b2_ref[...]

    # Final LayerNorm over the embedding dim: each example occupies E consecutive
    # rows, so reduce over axis=1 of the (Bt, E, S) view (layout-preserving split
    # of the sublane dim when E % 8 == 0; no lane data movement).
    rows, n_s = z.shape
    e_dim = lnh_w_ref.shape[0]
    z3 = z.reshape(rows // e_dim, e_dim, n_s)
    mu2 = jnp.mean(z3, axis=1, keepdims=True)
    var2 = jnp.mean((z3 - mu2) ** 2, axis=1, keepdims=True)
    out3 = (z3 - mu2) * jax.lax.rsqrt(var2 + eps) * lnh_w_ref[...] + lnh_b_ref[...]

    # Lane-dense store of the whole (rows, S) slab.
    o_ref[...] = out3.reshape(rows, n_s).astype(o_ref.dtype)


def _vmem_capacity_bytes():
    try:
        return int(pltpu.get_tpu_info().vmem_capacity_bytes)
    except Exception:
        return 64 << 20            # conservative (v7x-class) fallback


def _vmem_estimate_bytes(bt, S, E, H):
    """Rough per-step footprint: double-buffered x/out blocks, double-buffered
    bf16 weights, row-shaped small vectors, plus live-activation headroom."""
    f32, bf16, lane, sub = 4, 2, 128, 8
    pad = lambda n, m: -(-n // m) * m
    rows = pad(bt * E, sub)
    s_l, h_l = pad(S, lane), pad(H, lane)
    s_r, h_r = pad(S, sub), pad(H, sub)
    io = 2 * 2 * rows * s_l * f32                       # x + out blocks
    wts = 2 * (s_r * h_l + h_r * s_l) * bf16            # w1 + w2 (double-buffered)
    vecs = 2 * (3 * s_l + h_l + 2 * lane) * sub * f32   # biases + LN params (row form)
    act = 6 * rows * max(s_l, h_l) * f32                # temporaries headroom
    return io + wts + vecs + act + (4 << 20)


def _vmem_limit_bytes(bt, S, E, H):
    cap = max(int(0.75 * _vmem_capacity_bytes()), 32 << 20)
    est = _vmem_estimate_bytes(bt, S, E, H)
    return int(min(max(32 << 20, est), cap))


def _pick_batch_tile(B, E, S, H):
    """Pick Bt so the per-step row count Bt*E (the matmul M dim) is ~512 to
    amortize pipeline-step overhead, the grid extent stays >= 2 when B allows
    (v7x megacore load balance), the block shape is legal (Bt*E % 8 == 0 or
    Bt == B), and the footprint fits the generation's VMEM capacity."""
    cands = sorted(d for d in range(1, B + 1)
                   if B % d == 0 and ((d * E) % 8 == 0 or d == B))
    pref = [d for d in cands if B // d >= 2] or cands
    target_rows = 512
    pref = sorted(pref, key=lambda d: (abs(d * E - target_rows), -d))
    cap = max(int(0.75 * _vmem_capacity_bytes()), 32 << 20)
    for d in pref:
        if _vmem_estimate_bytes(d, S, E, H) <= cap:
            return d
    return cands[0]


def no_graph_mixer(x, kp, batch_tile=None):
    """x: (B, S, E) float32; kp: kernel-layout params from prepare_params()."""
    B, S, E = x.shape
    H = kp["w1"].shape[1]
    bt = batch_tile if batch_tile is not None else _pick_batch_tile(B, E, S, H)
    rows = bt * E
    grid = (pl.cdiv(B, bt),)

    # Layout plumbing (XLA side, not compute): realize the module's first permute
    # once so the kernel sees a lane-dense (B*E, S) slab.
    x2 = jnp.transpose(x, (0, 2, 1)).reshape(B * E, S)

    full = lambda shape: pl.BlockSpec(shape, lambda i: (0, 0))

    out2 = pl.pallas_call(
        _mixer_kernel,
        out_shape=jax.ShapeDtypeStruct((B * E, S), jnp.float32),
        grid_spec=pltpu.PrefetchScalarGridSpec(
            num_scalar_prefetch=0,
            grid=grid,
            in_specs=[
                pl.BlockSpec((rows, S), lambda i: (i, 0)),   # x slab (Bt*E, S)
                full((S, H)),                                # dense1 weight (bf16)
                full((1, H)),                                # dense1 bias (row)
                full((H, S)),                                # dense2 weight / 6 (bf16)
                full((1, S)),                                # dense2 bias (row)
                full((1, S)),                                # layer_norm_stock.weight
                full((1, S)),                                # layer_norm_stock.bias
                full((E, 1)),                                # layer_norm_hidden.weight
                full((E, 1)),                                # layer_norm_hidden.bias
            ],
            out_specs=pl.BlockSpec((rows, S), lambda i: (i, 0)),
        ),
        compiler_params=pltpu.CompilerParams(
            dimension_semantics=("parallel",),
            vmem_limit_bytes=_vmem_limit_bytes(bt, S, E, H)),
    )(x2, kp["w1"], kp["b1"], kp["w2_6"], kp["b2"],
      kp["lns_w"], kp["lns_b"], kp["lnh_w"], kp["lnh_b"])

    # Undo the layout plumbing: (B*E, S) -> (B, E, S) -> (B, S, E).
    return jnp.transpose(out2.reshape(B, E, S), (0, 2, 1))


def prepare_params(p):
    """One-time wrapper-side prep (layout plumbing, not compute-hoisting):
       - dense weights kept in (in, out) orientation for the row-major matmuls,
         cast to bf16 (kernel accumulates in f32),
       - Hardswish 1/6 folded into dense2's weight (exact),
       - per-S / per-H vectors stored ROW-shaped (1,N) so they broadcast with no
         in-kernel transpose and use ~16x less VMEM than column form,
       - per-E LayerNorm params stored (E,1) so they broadcast over (Bt,E,S)."""
    return {
        "w1":    jnp.asarray(p["w1"], jnp.bfloat16),                    # (S, H)
        "b1":    jnp.asarray(p["b1"].reshape(1, -1), jnp.float32),      # (1, H)
        "w2_6":  jnp.asarray(p["w2"] / 6.0, jnp.bfloat16),              # (H, S)
        "b2":    jnp.asarray(p["b2"].reshape(1, -1), jnp.float32),      # (1, S)
        "lns_w": jnp.asarray(p["lns_w"].reshape(1, -1), jnp.float32),   # (1, S)
        "lns_b": jnp.asarray(p["lns_b"].reshape(1, -1), jnp.float32),   # (1, S)
        "lnh_w": jnp.asarray(p["lnh_w"].reshape(-1, 1), jnp.float32),   # (E, 1)
        "lnh_b": jnp.asarray(p["lnh_b"].reshape(-1, 1), jnp.float32),   # (E, 1)
    }


def init_params(key, n_stocks, hidden_dim, embedding_dim):
    """Deterministic init mirroring the PyTorch module's __init__:
       kaiming_uniform_(fan_in, nonlinearity='tanh') for dense weights,
       default Linear bias init, LayerNorm weight=1 / bias=0."""
    k1, k2, k3, k4 = jax.random.split(key, 4)
    gain = 5.0 / 3.0  # tanh gain

    # dense1: torch weight (H, S), fan_in = S; stored transposed as (S, H)
    bound1 = gain * jnp.sqrt(3.0 / n_stocks)
    w1 = jax.random.uniform(k1, (n_stocks, hidden_dim), jnp.float32, -bound1, bound1)
    bb1 = 1.0 / jnp.sqrt(n_stocks)
    b1 = jax.random.uniform(k2, (1, hidden_dim), jnp.float32, -bb1, bb1)

    # dense2: torch weight (S, H), fan_in = H; stored transposed as (H, S)
    bound2 = gain * jnp.sqrt(3.0 / hidden_dim)
    w2 = jax.random.uniform(k3, (hidden_dim, n_stocks), jnp.float32, -bound2, bound2)
    bb2 = 1.0 / jnp.sqrt(hidden_dim)
    b2 = jax.random.uniform(k4, (1, n_stocks), jnp.float32, -bb2, bb2)

    return {
        "w1": w1, "b1": b1, "w2": w2, "b2": b2,
        "lns_w": jnp.ones((1, n_stocks), jnp.float32),
        "lns_b": jnp.zeros((1, n_stocks), jnp.float32),
        "lnh_w": jnp.ones((1, embedding_dim), jnp.float32),
        "lnh_b": jnp.zeros((1, embedding_dim), jnp.float32),
    }


def reference(x, p):
    """Pure-JAX f32 reference of NoGraphMixer.forward for verification."""
    eps = 1e-5
    xt = jnp.transpose(x, (0, 2, 1))                         # (B, E, S)
    mu = xt.mean(-1, keepdims=True)
    var = ((xt - mu) ** 2).mean(-1, keepdims=True)
    xn = (xt - mu) / jnp.sqrt(var + eps) * p["lns_w"][0] + p["lns_b"][0]
    h = xn @ p["w1"] + p["b1"][0]
    h = h * jnp.clip(h + 3.0, 0.0, 6.0) / 6.0
    z = h @ p["w2"] + p["b2"][0]
    zt = jnp.transpose(z, (0, 2, 1))                         # (B, S, E)
    mu2 = zt.mean(-1, keepdims=True)
    var2 = ((zt - mu2) ** 2).mean(-1, keepdims=True)
    return (zt - mu2) / jnp.sqrt(var2 + eps) * p["lnh_w"][0] + p["lnh_b"][0]


if __name__ == "__main__":
    B, S, E, H = 2, 8, 16, 32        # batch, n_stocks, embedding_dim, hidden_dim
    key = jax.random.PRNGKey(0)
    kx, kp_key = jax.random.split(key)
    x = jax.random.normal(kx, (B, S, E), jnp.float32)
    params = init_params(kp_key, n_stocks=S, hidden_dim=H, embedding_dim=E)
    kparams = prepare_params(params)   # one-time weight prep (bf16 cast, fold 1/6)

    out = jax.block_until_ready(no_graph_mixer(x, kparams))
    ref = reference(x, params)

    assert out.shape == (B, S, E)
    # bf16 matmul inputs with f32 accumulation: validate against the f32 reference
    # at a correspondingly looser tolerance (the trailing LayerNorm bounds the error).
    assert jnp.allclose(out, ref, atol=5e-2, rtol=5e-2), "mismatch vs JAX reference"
    print("KERNEL_OK")
</pallas_src>

<mosaic_0001>
module attributes {stable_mosaic.version = 11 : i64} {
  func.func @_mixer_kernel(%arg0: i32, %arg1: memref<16x8xf32, #tpu.memory_space<vmem>>, %arg2: memref<8x32xbf16, #tpu.memory_space<vmem>>, %arg3: memref<1x32xf32, #tpu.memory_space<vmem>>, %arg4: memref<32x8xbf16, #tpu.memory_space<vmem>>, %arg5: memref<1x8xf32, #tpu.memory_space<vmem>>, %arg6: memref<1x8xf32, #tpu.memory_space<vmem>>, %arg7: memref<1x8xf32, #tpu.memory_space<vmem>>, %arg8: memref<16x1xf32, #tpu.memory_space<vmem>>, %arg9: memref<16x1xf32, #tpu.memory_space<vmem>>, %arg10: memref<16x8xf32, #tpu.memory_space<vmem>>) attributes {dimension_semantics = [#tpu.dimension_semantics<parallel>], iteration_bounds = array<i64: 2>, scalar_prefetch = 0 : i64, scratch_operands = 0 : i64, tpu.core_type = #tpu.core_type<tc>, window_params = [{transform_indices = @transform_0, window_bounds = array<i64: 16, 8>}, {pipeline_mode = #tpu.pipeline_mode<synchronous>, transform_indices = @transform_1, window_bounds = array<i64: 8, 32>}, {pipeline_mode = #tpu.pipeline_mode<synchronous>, transform_indices = @transform_2, window_bounds = array<i64: 1, 32>}, {pipeline_mode = #tpu.pipeline_mode<synchronous>, transform_indices = @transform_3, window_bounds = array<i64: 32, 8>}, {pipeline_mode = #tpu.pipeline_mode<synchronous>, transform_indices = @transform_4, window_bounds = array<i64: 1, 8>}, {pipeline_mode = #tpu.pipeline_mode<synchronous>, transform_indices = @transform_5, window_bounds = array<i64: 1, 8>}, {pipeline_mode = #tpu.pipeline_mode<synchronous>, transform_indices = @transform_6, window_bounds = array<i64: 1, 8>}, {pipeline_mode = #tpu.pipeline_mode<synchronous>, transform_indices = @transform_7, window_bounds = array<i64: 16, 1>}, {pipeline_mode = #tpu.pipeline_mode<synchronous>, transform_indices = @transform_8, window_bounds = array<i64: 16, 1>}, {transform_indices = @transform_9, window_bounds = array<i64: 16, 8>}]} {
    %c0 = arith.constant 0 : index
    %c0_0 = arith.constant 0 : index
    %0 = vector.load %arg1[%c0, %c0_0] : memref<16x8xf32, #tpu.memory_space<vmem>>, vector<16x8xf32>
    %cst = arith.constant dense<0.000000e+00> : vector<16xf32>
    %1 = vector.multi_reduction <add>, %0, %cst [1] : vector<16x8xf32> to vector<16xf32>
    %2 = vector.shape_cast %1 : vector<16xf32> to vector<16x1xf32>
    %cst_1 = arith.constant 8.000000e+00 : f32
    %3 = vector.broadcast %cst_1 : f32 to vector<16x1xf32>
    %4 = arith.divf %2, %3 : vector<16x1xf32>
    %5 = vector.broadcast %4 : vector<16x1xf32> to vector<16x8xf32>
    %6 = arith.subf %0, %5 : vector<16x8xf32>
    %7 = arith.mulf %6, %6 : vector<16x8xf32>
    %cst_2 = arith.constant dense<0.000000e+00> : vector<16xf32>
    %8 = vector.multi_reduction <add>, %7, %cst_2 [1] : vector<16x8xf32> to vector<16xf32>
    %9 = vector.shape_cast %8 : vector<16xf32> to vector<16x1xf32>
    %cst_3 = arith.constant 8.000000e+00 : f32
    %10 = vector.broadcast %cst_3 : f32 to vector<16x1xf32>
    %11 = arith.divf %9, %10 : vector<16x1xf32>
    %12 = vector.broadcast %4 : vector<16x1xf32> to vector<16x8xf32>
    %13 = arith.subf %0, %12 : vector<16x8xf32>
    %cst_4 = arith.constant 9.99999974E-6 : f32
    %14 = vector.broadcast %cst_4 : f32 to vector<16x1xf32>
    %15 = arith.addf %11, %14 : vector<16x1xf32>
    %16 = math.rsqrt %15 : vector<16x1xf32>
    %17 = vector.broadcast %16 : vector<16x1xf32> to vector<16x8xf32>
    %18 = arith.mulf %13, %17 : vector<16x8xf32>
    %c0_5 = arith.constant 0 : index
    %c0_6 = arith.constant 0 : index
    %19 = vector.load %arg6[%c0_5, %c0_6] : memref<1x8xf32, #tpu.memory_space<vmem>>, vector<1x8xf32>
    %20 = vector.broadcast %19 : vector<1x8xf32> to vector<16x8xf32>
    %21 = arith.mulf %18, %20 : vector<16x8xf32>
    %c0_7 = arith.constant 0 : index
    %c0_8 = arith.constant 0 : index
    %22 = vector.load %arg7[%c0_7, %c0_8] : memref<1x8xf32, #tpu.memory_space<vmem>>, vector<1x8xf32>
    %23 = vector.broadcast %22 : vector<1x8xf32> to vector<16x8xf32>
    %24 = arith.addf %21, %23 : vector<16x8xf32>
    %25 = arith.truncf %24 : vector<16x8xf32> to vector<16x8xbf16>
    %c0_9 = arith.constant 0 : index
    %c0_10 = arith.constant 0 : index
    %26 = vector.load %arg2[%c0_9, %c0_10] : memref<8x32xbf16, #tpu.memory_space<vmem>>, vector<8x32xbf16>
    %cst_11 = arith.constant dense<0.000000e+00> : vector<16x32xf32>
    %27 = tpu.matmul %25, %26, %cst_11 {dimension_numbers = #tpu.dot_dimension_numbers<[1], [0], [0], [1], [0, 0, 1, 1], [], []>} : vector<16x8xbf16>, vector<8x32xbf16>, vector<16x32xf32> -> vector<16x32xf32>
    %c0_12 = arith.constant 0 : index
    %c0_13 = arith.constant 0 : index
    %28 = vector.load %arg3[%c0_12, %c0_13] : memref<1x32xf32, #tpu.memory_space<vmem>>, vector<1x32xf32>
    %29 = vector.broadcast %28 : vector<1x32xf32> to vector<16x32xf32>
    %30 = arith.addf %27, %29 : vector<16x32xf32>
    %cst_14 = arith.constant 3.000000e+00 : f32
    %31 = vector.broadcast %cst_14 : f32 to vector<16x32xf32>
    %32 = arith.addf %30, %31 : vector<16x32xf32>
    %cst_15 = arith.constant 0.000000e+00 : f32
    %cst_16 = arith.constant 6.000000e+00 : f32
    %33 = vector.broadcast %cst_15 : f32 to vector<16x32xf32>
    %34 = arith.maximumf %33, %32 : vector<16x32xf32>
    %35 = vector.broadcast %cst_16 : f32 to vector<16x32xf32>
    %36 = arith.minimumf %35, %34 : vector<16x32xf32>
    %37 = arith.mulf %30, %36 : vector<16x32xf32>
    %38 = arith.truncf %37 : vector<16x32xf32> to vector<16x32xbf16>
    %c0_17 = arith.constant 0 : index
    %c0_18 = arith.constant 0 : index
    %39 = vector.load %arg4[%c0_17, %c0_18] : memref<32x8xbf16, #tpu.memory_space<vmem>>, vector<32x8xbf16>
    %cst_19 = arith.constant dense<0.000000e+00> : vector<16x8xf32>
    %40 = tpu.matmul %38, %39, %cst_19 {dimension_numbers = #tpu.dot_dimension_numbers<[1], [0], [0], [1], [0, 0, 1, 1], [], []>} : vector<16x32xbf16>, vector<32x8xbf16>, vector<16x8xf32> -> vector<16x8xf32>
    %c0_20 = arith.constant 0 : index
    %c0_21 = arith.constant 0 : index
    %41 = vector.load %arg5[%c0_20, %c0_21] : memref<1x8xf32, #tpu.memory_space<vmem>>, vector<1x8xf32>
    %42 = vector.broadcast %41 : vector<1x8xf32> to vector<16x8xf32>
    %43 = arith.addf %40, %42 : vector<16x8xf32>
    %44 = vector.shape_cast %43 : vector<16x8xf32> to vector<1x16x8xf32>
    %cst_22 = arith.constant dense<0.000000e+00> : vector<1x8xf32>
    %45 = vector.multi_reduction <add>, %44, %cst_22 [1] : vector<1x16x8xf32> to vector<1x8xf32>
    %46 = vector.shape_cast %45 : vector<1x8xf32> to vector<1x1x8xf32>
    %cst_23 = arith.constant 1.600000e+01 : f32
    %47 = vector.broadcast %cst_23 : f32 to vector<1x1x8xf32>
    %48 = arith.divf %46, %47 : vector<1x1x8xf32>
    %49 = vector.broadcast %48 : vector<1x1x8xf32> to vector<1x16x8xf32>
    %50 = arith.subf %44, %49 : vector<1x16x8xf32>
    %51 = arith.mulf %50, %50 : vector<1x16x8xf32>
    %cst_24 = arith.constant dense<0.000000e+00> : vector<1x8xf32>
    %52 = vector.multi_reduction <add>, %51, %cst_24 [1] : vector<1x16x8xf32> to vector<1x8xf32>
    %53 = vector.shape_cast %52 : vector<1x8xf32> to vector<1x1x8xf32>
    %cst_25 = arith.constant 1.600000e+01 : f32
    %54 = vector.broadcast %cst_25 : f32 to vector<1x1x8xf32>
    %55 = arith.divf %53, %54 : vector<1x1x8xf32>
    %56 = vector.broadcast %48 : vector<1x1x8xf32> to vector<1x16x8xf32>
    %57 = arith.subf %44, %56 : vector<1x16x8xf32>
    %cst_26 = arith.constant 9.99999974E-6 : f32
    %58 = vector.broadcast %cst_26 : f32 to vector<1x1x8xf32>
    %59 = arith.addf %55, %58 : vector<1x1x8xf32>
    %60 = math.rsqrt %59 : vector<1x1x8xf32>
    %61 = vector.broadcast %60 : vector<1x1x8xf32> to vector<1x16x8xf32>
    %62 = arith.mulf %57, %61 : vector<1x16x8xf32>
    %c0_27 = arith.constant 0 : index
    %c0_28 = arith.constant 0 : index
    %63 = vector.load %arg8[%c0_27, %c0_28] : memref<16x1xf32, #tpu.memory_space<vmem>>, vector<16x1xf32>
    %64 = vector.shape_cast %63 : vector<16x1xf32> to vector<1x16x1xf32>
    %65 = vector.broadcast %64 : vector<1x16x1xf32> to vector<1x16x8xf32>
    %66 = arith.mulf %62, %65 : vector<1x16x8xf32>
    %c0_29 = arith.constant 0 : index
    %c0_30 = arith.constant 0 : index
    %67 = vector.load %arg9[%c0_29, %c0_30] : memref<16x1xf32, #tpu.memory_space<vmem>>, vector<16x1xf32>
    %68 = vector.shape_cast %67 : vector<16x1xf32> to vector<1x16x1xf32>
    %69 = vector.broadcast %68 : vector<1x16x1xf32> to vector<1x16x8xf32>
    %70 = arith.addf %66, %69 : vector<1x16x8xf32>
    %71 = vector.shape_cast %70 : vector<1x16x8xf32> to vector<16x8xf32>
    %c0_31 = arith.constant 0 : index
    %c0_32 = arith.constant 0 : index
    %72 = vector.load %arg10[%c0_31, %c0_32] : memref<16x8xf32, #tpu.memory_space<vmem>>, vector<16x8xf32>
    tpu.vector_store %arg10[%c0_31, %c0_32], %71 {strides = array<i32>} : memref<16x8xf32, #tpu.memory_space<vmem>>, vector<16x8xf32>,
    return
  }
  func.func @transform_0(%arg0: i32) -> (i32, i32) {
    %c0_i32 = arith.constant 0 : i32
    %c0_i32_0 = arith.constant 0 : i32
    return %arg0, %c0_i32 : i32, i32
  }
  func.func @transform_1(%arg0: i32) -> (i32, i32) {
    %c0_i32 = arith.constant 0 : i32
    %c0_i32_0 = arith.constant 0 : i32
    %c0_i32_1 = arith.constant 0 : i32
    return %c0_i32, %c0_i32_0 : i32, i32
  }
  func.func @transform_2(%arg0: i32) -> (i32, i32) {
    %c0_i32 = arith.constant 0 : i32
    %c0_i32_0 = arith.constant 0 : i32
    %c0_i32_1 = arith.constant 0 : i32
    return %c0_i32, %c0_i32_0 : i32, i32
  }
  func.func @transform_3(%arg0: i32) -> (i32, i32) {
    %c0_i32 = arith.constant 0 : i32
    %c0_i32_0 = arith.constant 0 : i32
    %c0_i32_1 = arith.constant 0 : i32
    return %c0_i32, %c0_i32_0 : i32, i32
  }
  func.func @transform_4(%arg0: i32) -> (i32, i32) {
    %c0_i32 = arith.constant 0 : i32
    %c0_i32_0 = arith.constant 0 : i32
    %c0_i32_1 = arith.constant 0 : i32
    return %c0_i32, %c0_i32_0 : i32, i32
  }
  func.func @transform_5(%arg0: i32) -> (i32, i32) {
    %c0_i32 = arith.constant 0 : i32
    %c0_i32_0 = arith.constant 0 : i32
    %c0_i32_1 = arith.constant 0 : i32
    return %c0_i32, %c0_i32_0 : i32, i32
  }
  func.func @transform_6(%arg0: i32) -> (i32, i32) {
    %c0_i32 = arith.constant 0 : i32
    %c0_i32_0 = arith.constant 0 : i32
    %c0_i32_1 = arith.constant 0 : i32
    return %c0_i32, %c0_i32_0 : i32, i32
  }
  func.func @transform_7(%arg0: i32) -> (i32, i32) {
    %c0_i32 = arith.constant 0 : i32
    %c0_i32_0 = arith.constant 0 : i32
    %c0_i32_1 = arith.constant 0 : i32
    return %c0_i32, %c0_i32_0 : i32, i32
  }
  func.func @transform_8(%arg0: i32) -> (i32, i32) {
    %c0_i32 = arith.constant 0 : i32
    %c0_i32_0 = arith.constant 0 : i32
    %c0_i32_1 = arith.constant 0 : i32
    return %c0_i32, %c0_i32_0 : i32, i32
  }
  func.func @transform_9(%arg0: i32) -> (i32, i32) {
    %c0_i32 = arith.constant 0 : i32
    %c0_i32_0 = arith.constant 0 : i32
    return %arg0, %c0_i32 : i32, i32
  }
}

</mosaic_0001>

<llo_original>
// kernel: tpu_custom_call.1
$region0: #{tpu_custom_call.1}
  #allocation0 [shape = 'u32[]', space=smem, size = 0x4, offset = 0x4, fixed_abs, tag = 'smem constant byte address 0x4 - core index']
  #allocation1 [shape = 'u32[144,128]{1,0:T(1,128)}', space=vmem, size = 0x12000, scoped, tag = 'internal scratch']
  %s0 = inlined_call_operand.vmem [shape: f32[32,8], index: 0, kind: input, shape index: {}]
  %s1 = inlined_call_operand.vmem [shape: bf16[8,32], index: 1, kind: input, shape index: {}]
  %s2 = inlined_call_operand.vmem [shape: f32[1,32], index: 2, kind: input, shape index: {}]
  %s3 = inlined_call_operand.vmem [shape: bf16[32,8], index: 3, kind: input, shape index: {}]
  %s4 = inlined_call_operand.vmem [shape: f32[1,8], index: 4, kind: input, shape index: {}]
  %s5 = inlined_call_operand.vmem [shape: f32[1,8], index: 5, kind: input, shape index: {}]
  %s6 = inlined_call_operand.vmem [shape: f32[1,8], index: 6, kind: input, shape index: {}]
  %s7 = inlined_call_operand.vmem [shape: f32[16,1], index: 7, kind: input, shape index: {}]
  %s8 = inlined_call_operand.vmem [shape: f32[16,1], index: 8, kind: input, shape index: {}]
  %s9 = inlined_call_operand.vmem [shape: f32[32,8], index: 9, kind: output, shape index: {}]
  %s10 = sld [smem:[#allocation0]]
  $region69: #{tpu_custom_call.1} parent=0
    _
  %s12 = ssub.s32 1, %s10
  %s13 = scalar_select 0, %s12, %s10
  loop: start=0, step=1, limit=4
  $region2: #{tpu_custom_call.1} parent=0 // loop_pre_header
    _
  $region3: #{tpu_custom_call.1} parent=0 // loop_header
    %s15 = sphi 0, %s19
    %p16 = scmp.ge.s32.totalorder %s15, 4
    %s25 = sphi 0, %s27
    %s28 = sphi 0, %s25
    %s29 = sphi 0, %s28
    %s45 = sphi 0, %s29
    %s49 = sphi 0, %s49
    %s51 = sphi 0, %s49
    %s52 = sphi 0, %s51
    %s66 = sphi 0, %s52
    %s70 = sphi 0, %s70
    %s72 = sphi 0, %s70
    %s73 = sphi 0, %s72
    %s87 = sphi 0, %s73
    %s91 = sphi 0, %s91
    %s93 = sphi 0, %s91
    %s94 = sphi 0, %s93
    %s108 = sphi 0, %s94
    %s112 = sphi 0, %s112
    %s114 = sphi 0, %s112
    %s115 = sphi 0, %s114
    %s129 = sphi 0, %s115
    %s133 = sphi 0, %s133
    %s135 = sphi 0, %s133
    %s136 = sphi 0, %s135
    %s150 = sphi 0, %s136
    %s154 = sphi 0, %s154
    %s156 = sphi 0, %s154
    %s157 = sphi 0, %s156
    %s171 = sphi 0, %s157
    %s175 = sphi 0, %s175
    %s177 = sphi 0, %s175
    %s178 = sphi 0, %s177
    %s192 = sphi 0, %s178
    %s196 = sphi 0, %s196
    %s198 = sphi 0, %s196
    %s199 = sphi 0, %s198
    %s213 = sphi 0, %s199
    %s219 = sphi 0, %s221
    %s222 = sphi 0, %s219
    %s223 = sphi 0, %s222
    %s239 = sphi 0, %s223
  $region4: #{tpu_custom_call.1} parent=0 // loop_header_branch
    %18 = sbr.rel (%p16) target = $region8
  $region5: #{tpu_custom_call.1} parent=0 // loop_body
    %s20 = ssub.s32 %s15, 1
    %s21 = ssub.s32 %s15, 2
    %s22 = sadd.s32 %s15, 1
    %s23 = ssub.s32 %s15, %s22
    %p24 = scmp.eq.s32.totalorder %s23, 0
    %s26 = sadd.s32 %s25, 1
    %s27 = scalar_select %p24, %s25, %s26
    %p30 = pneg %p24
    %p31 = scmp.eq.s32.totalorder %s15, 1
    %p32 = por %p30, %p31
    %p33 = scmp.ne.s32.totalorder %s25, %s28
    %p34 = scmp.eq.s32.totalorder %s15, 0
    %p35 = por %p33, %p34
    %p36 = scmp.ne.s32.totalorder %s25, %s28
    %p37 = scmp.eq.s32.totalorder %s20, 1
    %p38 = por %p36, %p37
    %p39 = scmp.ne.s32.totalorder %s28, %s29
    %p40 = scmp.eq.s32.totalorder %s20, 0
    %p41 = por %p39, %p40
    %p42 = scmp.ne.s32.totalorder %s28, %s29
    %p43 = scmp.eq.s32.totalorder %s21, 1
    %p44 = por %p42, %p43
    %p46 = scmp.ne.s32.totalorder %s29, %s45
    %p47 = scmp.eq.s32.totalorder %s21, 0
    %p48 = por %p46, %p47
    %s50 = sadd.s32 %s49, 1
    %p53 = scmp.eq.s32.totalorder %s15, 1
    %p54 = scmp.ne.s32.totalorder %s49, %s51
    %p55 = scmp.eq.s32.totalorder %s15, 0
    %p56 = por %p54, %p55
    %p57 = scmp.ne.s32.totalorder %s49, %s51
    %p58 = scmp.eq.s32.totalorder %s20, 1
    %p59 = por %p57, %p58
    %p60 = scmp.ne.s32.totalorder %s51, %s52
    %p61 = scmp.eq.s32.totalorder %s20, 0
    %p62 = por %p60, %p61
    %p63 = scmp.ne.s32.totalorder %s51, %s52
    %p64 = scmp.eq.s32.totalorder %s21, 1
    %p65 = por %p63, %p64
    %p67 = scmp.ne.s32.totalorder %s52, %s66
    %p68 = scmp.eq.s32.totalorder %s21, 0
    %p69 = por %p67, %p68
    %s71 = sadd.s32 %s70, 1
    %p74 = scmp.eq.s32.totalorder %s15, 1
    %p75 = scmp.ne.s32.totalorder %s70, %s72
    %p76 = scmp.eq.s32.totalorder %s15, 0
    %p77 = por %p75, %p76
    %p78 = scmp.ne.s32.totalorder %s70, %s72
    %p79 = scmp.eq.s32.totalorder %s20, 1
    %p80 = por %p78, %p79
    %p81 = scmp.ne.s32.totalorder %s72, %s73
    %p82 = scmp.eq.s32.totalorder %s20, 0
    %p83 = por %p81, %p82
    %p84 = scmp.ne.s32.totalorder %s72, %s73
    %p85 = scmp.eq.s32.totalorder %s21, 1
    %p86 = por %p84, %p85
    %p88 = scmp.ne.s32.totalorder %s73, %s87
    %p89 = scmp.eq.s32.totalorder %s21, 0
    %p90 = por %p88, %p89
    %s92 = sadd.s32 %s91, 1
    %p95 = scmp.eq.s32.totalorder %s15, 1
    %p96 = scmp.ne.s32.totalorder %s91, %s93
    %p97 = scmp.eq.s32.totalorder %s15, 0
    %p98 = por %p96, %p97
    %p99 = scmp.ne.s32.totalorder %s91, %s93
    %p100 = scmp.eq.s32.totalorder %s20, 1
    %p101 = por %p99, %p100
    %p102 = scmp.ne.s32.totalorder %s93, %s94
    %p103 = scmp.eq.s32.totalorder %s20, 0
    %p104 = por %p102, %p103
    %p105 = scmp.ne.s32.totalorder %s93, %s94
    %p106 = scmp.eq.s32.totalorder %s21, 1
    %p107 = por %p105, %p106
    %p109 = scmp.ne.s32.totalorder %s94, %s108
    %p110 = scmp.eq.s32.totalorder %s21, 0
    %p111 = por %p109, %p110
    %s113 = sadd.s32 %s112, 1
    %p116 = scmp.eq.s32.totalorder %s15, 1
    %p117 = scmp.ne.s32.totalorder %s112, %s114
    %p118 = scmp.eq.s32.totalorder %s15, 0
    %p119 = por %p117, %p118
    %p120 = scmp.ne.s32.totalorder %s112, %s114
    %p121 = scmp.eq.s32.totalorder %s20, 1
    %p122 = por %p120, %p121
    %p123 = scmp.ne.s32.totalorder %s114, %s115
    %p124 = scmp.eq.s32.totalorder %s20, 0
    %p125 = por %p123, %p124
    %p126 = scmp.ne.s32.totalorder %s114, %s115
    %p127 = scmp.eq.s32.totalorder %s21, 1
    %p128 = por %p126, %p127
    %p130 = scmp.ne.s32.totalorder %s115, %s129
    %p131 = scmp.eq.s32.totalorder %s21, 0
    %p132 = por %p130, %p131
    %s134 = sadd.s32 %s133, 1
    %p137 = scmp.eq.s32.totalorder %s15, 1
    %p138 = scmp.ne.s32.totalorder %s133, %s135
    %p139 = scmp.eq.s32.totalorder %s15, 0
    %p140 = por %p138, %p139
    %p141 = scmp.ne.s32.totalorder %s133, %s135
    %p142 = scmp.eq.s32.totalorder %s20, 1
    %p143 = por %p141, %p142
    %p144 = scmp.ne.s32.totalorder %s135, %s136
    %p145 = scmp.eq.s32.totalorder %s20, 0
    %p146 = por %p144, %p145
    %p147 = scmp.ne.s32.totalorder %s135, %s136
    %p148 = scmp.eq.s32.totalorder %s21, 1
    %p149 = por %p147, %p148
    %p151 = scmp.ne.s32.totalorder %s136, %s150
    %p152 = scmp.eq.s32.totalorder %s21, 0
    %p153 = por %p151, %p152
    %s155 = sadd.s32 %s154, 1
    %p158 = scmp.eq.s32.totalorder %s15, 1
    %p159 = scmp.ne.s32.totalorder %s154, %s156
    %p160 = scmp.eq.s32.totalorder %s15, 0
    %p161 = por %p159, %p160
    %p162 = scmp.ne.s32.totalorder %s154, %s156
    %p163 = scmp.eq.s32.totalorder %s20, 1
    %p164 = por %p162, %p163
    %p165 = scmp.ne.s32.totalorder %s156, %s157
    %p166 = scmp.eq.s32.totalorder %s20, 0
    %p167 = por %p165, %p166
    %p168 = scmp.ne.s32.totalorder %s156, %s157
    %p169 = scmp.eq.s32.totalorder %s21, 1
    %p170 = por %p168, %p169
    %p172 = scmp.ne.s32.totalorder %s157, %s171
    %p173 = scmp.eq.s32.totalorder %s21, 0
    %p174 = por %p172, %p173
    %s176 = sadd.s32 %s175, 1
    %p179 = scmp.eq.s32.totalorder %s15, 1
    %p180 = scmp.ne.s32.totalorder %s175, %s177
    %p181 = scmp.eq.s32.totalorder %s15, 0
    %p182 = por %p180, %p181
    %p183 = scmp.ne.s32.totalorder %s175, %s177
    %p184 = scmp.eq.s32.totalorder %s20, 1
    %p185 = por %p183, %p184
    %p186 = scmp.ne.s32.totalorder %s177, %s178
    %p187 = scmp.eq.s32.totalorder %s20, 0
    %p188 = por %p186, %p187
    %p189 = scmp.ne.s32.totalorder %s177, %s178
    %p190 = scmp.eq.s32.totalorder %s21, 1
    %p191 = por %p189, %p190
    %p193 = scmp.ne.s32.totalorder %s178, %s192
    %p194 = scmp.eq.s32.totalorder %s21, 0
    %p195 = por %p193, %p194
    %s197 = sadd.s32 %s196, 1
    %p200 = scmp.eq.s32.totalorder %s15, 1
    %p201 = scmp.ne.s32.totalorder %s196, %s198
    %p202 = scmp.eq.s32.totalorder %s15, 0
    %p203 = por %p201, %p202
    %p204 = scmp.ne.s32.totalorder %s196, %s198
    %p205 = scmp.eq.s32.totalorder %s20, 1
    %p206 = por %p204, %p205
    %p207 = scmp.ne.s32.totalorder %s198, %s199
    %p208 = scmp.eq.s32.totalorder %s20, 0
    %p209 = por %p207, %p208
    %p210 = scmp.ne.s32.totalorder %s198, %s199
    %p211 = scmp.eq.s32.totalorder %s21, 1
    %p212 = por %p210, %p211
    %p214 = scmp.ne.s32.totalorder %s199, %s213
    %p215 = scmp.eq.s32.totalorder %s21, 0
    %p216 = por %p214, %p215
    %s217 = ssub.s32 %s15, %s22
    %p218 = scmp.eq.s32.totalorder %s217, 0
    %s220 = sadd.s32 %s219, 1
    %s221 = scalar_select %p218, %s219, %s220
    %p224 = pneg %p218
    %p225 = scmp.eq.s32.totalorder %s15, 1
    %p226 = por %p224, %p225
    %p227 = scmp.ne.s32.totalorder %s219, %s222
    %p228 = scmp.eq.s32.totalorder %s15, 0
    %p229 = por %p227, %p228
    %p230 = scmp.ne.s32.totalorder %s219, %s222
    %p231 = scmp.eq.s32.totalorder %s20, 1
    %p232 = por %p230, %p231
    %p233 = scmp.ne.s32.totalorder %s222, %s223
    %p234 = scmp.eq.s32.totalorder %s20, 0
    %p235 = por %p233, %p234
    %p236 = scmp.ne.s32.totalorder %s222, %s223
    %p237 = scmp.eq.s32.totalorder %s21, 1
    %p238 = por %p236, %p237
    %p240 = scmp.ne.s32.totalorder %s223, %s239
    %p241 = scmp.eq.s32.totalorder %s21, 0
    %p242 = por %p240, %p241
    %p243 = scmp.le.s32.totalorder 1, %s15
    %p244 = scmp.lt.s32.totalorder %s15, 3
    %p245 = pnand %p243, %p244
    %p246 = pneg %p245
    // Predicated region
    $region9: #{tpu_custom_call.1} parent=5 // pred_check
      _
    $region10: #{tpu_custom_call.1} parent=5 // pred_check_branch
      %248 = sbr.rel (%p245) target = $region12
    $region11: #{tpu_custom_call.1} parent=5 // pred_region
      %s249 = ssub.s32 %s15, 1
      // Predicated region
      $region13: #{tpu_custom_call.1} parent=11 // pred_check
        %p250 = pneg %p62
      $region14: #{tpu_custom_call.1} parent=11 // pred_check_branch
        %252 = sbr.rel (%p250) target = $region16
      $region15: #{tpu_custom_call.1} parent=11 // pred_region
        _
      $region16: #{tpu_custom_call.1} parent=11 // pred_fallthru
        _
      // Predicated region
      $region17: #{tpu_custom_call.1} parent=11 // pred_check
        %p253 = pneg %p83
      $region18: #{tpu_custom_call.1} parent=11 // pred_check_branch
        %255 = sbr.rel (%p253) target = $region20
      $region19: #{tpu_custom_call.1} parent=11 // pred_region
        _
      $region20: #{tpu_custom_call.1} parent=11 // pred_fallthru
        _
      // Predicated region
      $region21: #{tpu_custom_call.1} parent=11 // pred_check
        %p256 = pneg %p104
      $region22: #{tpu_custom_call.1} parent=11 // pred_check_branch
        %258 = sbr.rel (%p256) target = $region24
      $region23: #{tpu_custom_call.1} parent=11 // pred_region
        _
      $region24: #{tpu_custom_call.1} parent=11 // pred_fallthru
        _
      // Predicated region
      $region25: #{tpu_custom_call.1} parent=11 // pred_check
        %p259 = pneg %p125
      $region26: #{tpu_custom_call.1} parent=11 // pred_check_branch
        %261 = sbr.rel (%p259) target = $region28
      $region27: #{tpu_custom_call.1} parent=11 // pred_region
        _
      $region28: #{tpu_custom_call.1} parent=11 // pred_fallthru
        _
      // Predicated region
      $region29: #{tpu_custom_call.1} parent=11 // pred_check
        %p262 = pneg %p146
      $region30: #{tpu_custom_call.1} parent=11 // pred_check_branch
        %264 = sbr.rel (%p262) target = $region32
      $region31: #{tpu_custom_call.1} parent=11 // pred_region
        _
      $region32: #{tpu_custom_call.1} parent=11 // pred_fallthru
        _
      // Predicated region
      $region33: #{tpu_custom_call.1} parent=11 // pred_check
        %p265 = pneg %p167
      $region34: #{tpu_custom_call.1} parent=11 // pred_check_branch
        %267 = sbr.rel (%p265) target = $region36
      $region35: #{tpu_custom_call.1} parent=11 // pred_region
        _
      $region36: #{tpu_custom_call.1} parent=11 // pred_fallthru
        _
      // Predicated region
      $region37: #{tpu_custom_call.1} parent=11 // pred_check
        %p268 = pneg %p188
      $region38: #{tpu_custom_call.1} parent=11 // pred_check_branch
        %270 = sbr.rel (%p268) target = $region40
      $region39: #{tpu_custom_call.1} parent=11 // pred_region
        _
      $region40: #{tpu_custom_call.1} parent=11 // pred_fallthru
        _
      // Predicated region
      $region41: #{tpu_custom_call.1} parent=11 // pred_check
        %p271 = pneg %p209
      $region42: #{tpu_custom_call.1} parent=11 // pred_check_branch
        %273 = sbr.rel (%p271) target = $region44
      $region43: #{tpu_custom_call.1} parent=11 // pred_region
        _
      $region44: #{tpu_custom_call.1} parent=11 // pred_fallthru
        _
    $region12: #{tpu_custom_call.1} parent=5 // pred_fallthru
      _
    %p274 = scmp.lt.s32.totalorder %s15, 2
    // Predicated region
    $region45: #{tpu_custom_call.1} parent=5 // pred_check
      %p275 = pneg %p274
    $region46: #{tpu_custom_call.1} parent=5 // pred_check_branch
      %277 = sbr.rel (%p275) target = $region48
    $region47: #{tpu_custom_call.1} parent=5 // pred_region
      // Predicated region
      $region49: #{tpu_custom_call.1} parent=47 // pred_check
        %p278 = pneg %p35
      $region50: #{tpu_custom_call.1} parent=47 // pred_check_branch
        %280 = sbr.rel (%p278) target = $region52
      $region51: #{tpu_custom_call.1} parent=47 // pred_region
        %s281 = smul.u32 2, %s15
        %p282 = scmp.lt.s32.totalorder %s281, 3
        %s283 = scalar_select %p282, %s281, 3
        %s284 = smul.addr %s283, 8
        %s285 = scalar_lea.vmem %s0, %s284
        %s286 = smul.u32 2, %s15
      $region52: #{tpu_custom_call.1} parent=47 // pred_fallthru
        _
    $region48: #{tpu_custom_call.1} parent=5 // pred_fallthru
      _
    %p287 = scmp.le.s32.totalorder 1, %s15
    %p288 = scmp.lt.s32.totalorder %s15, 3
    %p289 = pnand %p287, %p288
    %p290 = pneg %p289
    // Predicated region
    $region53: #{tpu_custom_call.1} parent=5 // pred_check
      _
    $region54: #{tpu_custom_call.1} parent=5 // pred_check_branch
      %292 = sbr.rel (%p289) target = $region56
    $region55: #{tpu_custom_call.1} parent=5 // pred_region
      %s293 = ssub.s32 %s15, 1
      %s294 = smul.u32 2, %s20
      %p295 = scmp.lt.s32.totalorder %s294, 3
      %s296 = scalar_select %p295, %s294, 3
      %s297 = smul.addr %s296, 8
      %s298 = scalar_lea.vmem %s0, %s297
      %p299 = pneg %p41
      %p300 = pneg %p38
      %p301 = pneg %p62
      %p302 = pneg %p59
      %p303 = pneg %p83
      %p304 = pneg %p80
      %p305 = pneg %p104
      %p306 = pneg %p101
      %p307 = pneg %p125
      %p308 = pneg %p122
      %p309 = pneg %p146
      %p310 = pneg %p143
      %p311 = pneg %p167
      %p312 = pneg %p164
      %p313 = pneg %p188
      %p314 = pneg %p185
      %p315 = pneg %p209
      %p316 = pneg %p206
      %p317 = pneg %p235
      %p318 = pneg %p232
      %s319 = smul.u32 2, %s20
      %p320 = scmp.lt.s32.totalorder %s319, 3
      %s321 = scalar_select %p320, %s319, 3
      %s322 = smul.addr %s321, 8
      %s323 = scalar_lea.vmem %s9, %s322
      %s324 = smul.u32 2, %s20
      %p325 = scmp.lt.s32.totalorder %s324, 3
      %s326 = scalar_select %p325, %s324, 3
      %s327 = smul.addr %s326, 8
      %s328 = scalar_lea.vmem %s0, %s327
      %s329 = smul.u32 2, %s20
      %s330 = smul.u32 2, %s20
      %p331 = scmp.lt.s32.totalorder %s330, 3
      %s332 = scalar_select %p331, %s330, 3
      %s333 = smul.addr %s332, 8
      %s334 = scalar_lea.vmem %s9, %s333
      %s335 = smul.u32 2, %s20
      %v337 = vld [vmem:[%s328] sm:$0xff]
      %v338 = vld [vmem:[%s328 + $0x8] sm:$0xff]
      %vm339 = vcmask 64512
      %v340 = vsel %vm339, %v337, 0.0
      %341 = vadd.xlane.f32.xlu0 %v340
      %v342 = vpop.xlane.xlu0 %341
      %v343 = vsel %vm339, %v338, 0.0
      %344 = vadd.xlane.f32.xlu0 %v343
      %v345 = vpop.xlane.xlu0 %344
      %v346 = vrcp.pop 8.0
      %v347 = vmul.f32 %v342, %v346
      %v348 = vmul.f32 %v345, %v346
      %v349 = vsub.f32 %v337, %v347
      %v350 = vsub.f32 %v338, %v348
      %v351 = vmul.f32 %v349, %v349
      %v352 = vmul.f32 %v350, %v350
      %v353 = vsel %vm339, %v351, 0.0
      %354 = vadd.xlane.f32.xlu0 %v353
      %v355 = vpop.xlane.xlu0 %354
      %v356 = vsel %vm339, %v352, 0.0
      %357 = vadd.xlane.f32.xlu0 %v356
      %v358 = vpop.xlane.xlu0 %357
      %v359 = vmul.f32 %v355, %v346
      %v360 = vmul.f32 %v358, %v346
      %v361 = vadd.f32 %v359, 1e-05
      %v362 = vadd.f32 %v360, 1e-05
      %v363 = vrsqrt.pop %v361
      %v364 = vrsqrt.pop %v362
      %v365 = vmul.f32 %v349, %v363
      %v366 = vmul.f32 %v350, %v364
      %v367 = vld [vmem:[%s5] sm:$0x1]
      %v369 = vlaneseq
      %v370 = vshrl.u32 %v369, 7
      %v371 = vsub.s32 0, %v370
      %v372 = vrot.slane %v367, %v371
      %v374 = vmul.f32 %v365, %v372
      %v375 = vmul.f32 %v366, %v372
      %v376 = vld [vmem:[%s6] sm:$0x1]
      %v378 = vlaneseq
      %v379 = vshrl.u32 %v378, 7
      %v380 = vsub.s32 0, %v379
      %v381 = vrot.slane %v376, %v380
      %v383 = vadd.f32 %v374, %v381
      %v384 = vadd.f32 %v375, %v381
      %v385 = vpack.c.bf16 %v384, %v383
      %v386 = vld [vmem:[%s1] sm:$0xf]
      %v387 = vld [vmem:[%s2] sm:$0x1]
      %v389 = vlaneseq
      %v390 = vshrl.u32 %v389, 7
      %v391 = vsub.s32 0, %v390
      %v392 = vrot.slane %v387, %v391
      %v395 = vsel %vm339, %v385, 0
      %vm397 = vcmask 1043456
      %v399 = vsel %vm397, %v386, 0
      %401 = vmatprep.subr.bf16.mxu0 0
      %402 = vmatpush1.bf16.msra.mxu0 %v399
      %403 = vmatprep.subr.bf16.mxu0 0
      %404 = vmatpush1.bf16.msra.mxu0 0
      %405 = vmatprep.subr.bf16.mxu0 0
      %406 = vmatpush1.bf16.msra.mxu0 0
      %407 = vmatprep.subr.bf16.mxu0 0
      %408 = vmatpush1.bf16.msra.mxu0 0
      %409 = vmatprep.subr.bf16.mxu0 0
      %410 = vmatpush1.bf16.msra.mxu0 0
      %411 = vmatprep.subr.bf16.mxu0 0
      %412 = vmatpush1.bf16.msra.mxu0 0
      %413 = vmatprep.subr.bf16.mxu0 0
      %414 = vmatpush1.bf16.msra.mxu0 0
      %415 = vmatprep.subr.bf16.mxu0 0
      %416 = vmatpush1.bf16.msra.mxu0 0
      %417 = vmatprep.subr.bf16.mxu0 0
      %418 = vmatpush1.bf16.msra.mxu0 0
      %419 = vmatprep.subr.bf16.mxu0 0
      %420 = vmatpush1.bf16.msra.mxu0 0
      %421 = vmatprep.subr.bf16.mxu0 0
      %422 = vmatpush1.bf16.msra.mxu0 0
      %423 = vmatprep.subr.bf16.mxu0 0
      %424 = vmatpush1.bf16.msra.mxu0 0
      %425 = vmatprep.subr.bf16.mxu0 0
      %426 = vmatpush1.bf16.msra.mxu0 0
      %427 = vmatprep.subr.bf16.mxu0 0
      %428 = vmatpush1.bf16.msra.mxu0 0
      %429 = vmatprep.subr.bf16.mxu0 0
      %430 = vmatpush1.bf16.msra.mxu0 0
      %431 = vmatprep.subr.bf16.mxu0 0
      %432 = vmatpush1.bf16.msra.mxu0 0
      %433 = vmatprep.mubr.bf16.mxu0 0
      %434 = vmatmul.mubr.bf16.gmra.mrb[0].mxu0 %v395
      %v435 = vpop.f32.mrb[0].mxu0
      %v436 = vadd.f32 %v392, %v435
      %v437 = vpop.f32.mrb[0].mxu0
      %v438 = vpop.f32.mrb[0].mxu0
      %v439 = vadd.f32 %v392, %v438
      %v440 = vpop.f32.mrb[0].mxu0
      %441 = vdwg.mxu0
      %v442 = vadd.f32 %v436, 3.0
      %v443 = vadd.f32 %v439, 3.0
      %v444 = vmax.f32 %v442, 0.0
      %v445 = vmax.f32 %v443, 0.0
      %v446 = vmin.f32 %v444, 6.0
      %v447 = vmin.f32 %v445, 6.0
      %v448 = vmul.f32 %v436, %v446
      %v449 = vmul.f32 %v439, %v447
      %v450 = vpack.c.bf16 %v449, %v448
      %v451 = vld [vmem:[%s3] sm:$0xf]
      %v452 = vld [vmem:[%s3 + $0x4] sm:$0xf]
      %v453 = vld [vmem:[%s3 + $0x8] sm:$0xf]
      %v454 = vld [vmem:[%s3 + $0xc] sm:$0xf]
      %v455 = vld [vmem:[%s4] sm:$0x1]
      %v457 = vlaneseq
      %v458 = vshrl.u32 %v457, 7
      %v459 = vsub.s32 0, %v458
      %v460 = vrot.slane %v455, %v459
      %v466 = vunpack.c.l.b16 %v451
      %v467 = vunpack.c.l.b16 %v452
      %v468 = vunpack.c.l.b16 %v453
      %v469 = vunpack.c.l.b16 %v454
      %v470 = vpack.c.b16 %v467, %v466
      %v471 = vpack.c.b16 %v469, %v468
      %vm474 = vcmask 261120
      %v476 = vsel %vm474, %v450, 0
      %478 = vmatprep.subr.bf16.mxu0 0
      %479 = vmatpush1.bf16.msra.mxu0 %v470
      %480 = vmatprep.subr.bf16.mxu0 0
      %481 = vmatpush1.bf16.msra.mxu0 %v471
      %482 = vmatprep.subr.bf16.mxu0 0
      %483 = vmatpush1.bf16.msra.mxu0 0
      %484 = vmatprep.subr.bf16.mxu0 0
      %485 = vmatpush1.bf16.msra.mxu0 0
      %486 = vmatprep.subr.bf16.mxu0 0
      %487 = vmatpush1.bf16.msra.mxu0 0
      %488 = vmatprep.subr.bf16.mxu0 0
      %489 = vmatpush1.bf16.msra.mxu0 0
      %490 = vmatprep.subr.bf16.mxu0 0
      %491 = vmatpush1.bf16.msra.mxu0 0
      %492 = vmatprep.subr.bf16.mxu0 0
      %493 = vmatpush1.bf16.msra.mxu0 0
      %494 = vmatprep.subr.bf16.mxu0 0
      %495 = vmatpush1.bf16.msra.mxu0 0
      %496 = vmatprep.subr.bf16.mxu0 0
      %497 = vmatpush1.bf16.msra.mxu0 0
      %498 = vmatprep.subr.bf16.mxu0 0
      %499 = vmatpush1.bf16.msra.mxu0 0
      %500 = vmatprep.subr.bf16.mxu0 0
      %501 = vmatpush1.bf16.msra.mxu0 0
      %502 = vmatprep.subr.bf16.mxu0 0
      %503 = vmatpush1.bf16.msra.mxu0 0
      %504 = vmatprep.subr.bf16.mxu0 0
      %505 = vmatpush1.bf16.msra.mxu0 0
      %506 = vmatprep.subr.bf16.mxu0 0
      %507 = vmatpush1.bf16.msra.mxu0 0
      %508 = vmatprep.subr.bf16.mxu0 0
      %509 = vmatpush1.bf16.msra.mxu0 0
      %510 = vmatprep.mubr.bf16.mxu0 0
      %511 = vmatmul.mubr.bf16.gmra.mrb[0].mxu0 %v476
      %v512 = vpop.f32.mrb[0].mxu0
      %v513 = vadd.f32 %v460, %v512
      %v514 = vpop.f32.mrb[0].mxu0
      %v515 = vpop.f32.mrb[0].mxu0
      %v516 = vadd.f32 %v460, %v515
      %v517 = vpop.f32.mrb[0].mxu0
      %518 = vdwg.mxu0
      %v519 = vsel %vm339, %v513, 0.0
      %v520 = vsel %vm339, %v516, 0.0
      %v521 = vadd.f32 %v519, %v520
      %v522 = vrot.slane %v521, 4
      %v523 = vadd.f32 %v521, %v522
      %v524 = vrot.slane %v523, 2
      %v525 = vadd.f32 %v523, %v524
      %v526 = vrot.slane %v525, 1
      %v527 = vadd.f32 %v525, %v526
      %v528 = vrcp.pop 16.0
      %v529 = vmul.f32 %v527, %v528
      %v530 = vsub.f32 %v513, %v529
      %v531 = vsub.f32 %v516, %v529
      %v532 = vmul.f32 %v530, %v530
      %v533 = vmul.f32 %v531, %v531
      %v534 = vsel %vm339, %v532, 0.0
      %v535 = vsel %vm339, %v533, 0.0
      %v536 = vadd.f32 %v534, %v535
      %v537 = vrot.slane %v536, 4
      %v538 = vadd.f32 %v536, %v537
      %v539 = vrot.slane %v538, 2
      %v540 = vadd.f32 %v538, %v539
      %v541 = vrot.slane %v540, 1
      %v542 = vadd.f32 %v540, %v541
      %v543 = vmul.f32 %v542, %v528
      %v544 = vadd.f32 %v543, 1e-05
      %v545 = vrsqrt.pop %v544
      %v546 = vmul.f32 %v530, %v545
      %v547 = vmul.f32 %v531, %v545
      %v548 = vld [vmem:[%s7] sm:$0xff]
      %v549 = vld [vmem:[%s7 + $0x8] sm:$0xff]
      %551 = vset.pattern.permute.xlu0 0
      %552 = vperm.xlu0 %551, %v548
      %v553 = vpop.permute.xlu0 %552
      %556 = vset.pattern.permute.xlu0 0
      %557 = vperm.xlu0 %556, %v549
      %v558 = vpop.permute.xlu0 %557
      %v560 = vmul.f32 %v546, %v553
      %v561 = vmul.f32 %v547, %v558
      %v562 = vld [vmem:[%s8] sm:$0xff]
      %v563 = vld [vmem:[%s8 + $0x8] sm:$0xff]
      %565 = vset.pattern.permute.xlu0 0
      %566 = vperm.xlu0 %565, %v562
      %v567 = vpop.permute.xlu0 %566
      %570 = vset.pattern.permute.xlu0 0
      %571 = vperm.xlu0 %570, %v563
      %v572 = vpop.permute.xlu0 %571
      %v574 = vadd.f32 %v560, %v567
      %v575 = vadd.f32 %v561, %v572
      %576 = vst.msk [vmem:[%s334] sm:$0xff] %vm339, %v574
      %577 = vst.msk [vmem:[%s334 + $0x8] sm:$0xff] %vm339, %v575
      %s578 = smul.u32 2, %s20
      %p579 = scmp.lt.s32.totalorder %s578, 3
      %s580 = scalar_select %p579, %s578, 3
      %s581 = smul.addr %s580, 8
      %s582 = scalar_lea.vmem %s9, %s581
      // Predicated region
      $region57: #{tpu_custom_call.1} parent=55 // pred_check
        %p583 = pneg %p232
      $region58: #{tpu_custom_call.1} parent=55 // pred_check_branch
        %585 = sbr.rel (%p583) target = $region60
      $region59: #{tpu_custom_call.1} parent=55 // pred_region
        %s586 = smul.u32 2, %s20
      $region60: #{tpu_custom_call.1} parent=55 // pred_fallthru
        _
    $region56: #{tpu_custom_call.1} parent=5 // pred_fallthru
      _
    %p587 = scmp.le.s32.totalorder 2, %s15
    // Predicated region
    $region61: #{tpu_custom_call.1} parent=5 // pred_check
      %p588 = pneg %p587
    $region62: #{tpu_custom_call.1} parent=5 // pred_check_branch
      %590 = sbr.rel (%p588) target = $region64
    $region63: #{tpu_custom_call.1} parent=5 // pred_region
      %s591 = ssub.s32 %s15, 2
      // Predicated region
      $region65: #{tpu_custom_call.1} parent=63 // pred_check
        %p592 = pneg %p238
      $region66: #{tpu_custom_call.1} parent=63 // pred_check_branch
        %594 = sbr.rel (%p592) target = $region68
      $region67: #{tpu_custom_call.1} parent=63 // pred_region
        %s595 = smul.u32 2, %s21
        %p596 = scmp.lt.s32.totalorder %s595, 3
        %s597 = scalar_select %p596, %s595, 3
        %s598 = smul.addr %s597, 8
        %s599 = scalar_lea.vmem %s9, %s598
      $region68: #{tpu_custom_call.1} parent=63 // pred_fallthru
        _
    $region64: #{tpu_custom_call.1} parent=5 // pred_fallthru
      _
  $region6: #{tpu_custom_call.1} parent=0 // loop_footer
    %s19 = sadd.s32 1, %s15
  $region7: #{tpu_custom_call.1} parent=0 // loop_footer_branch
    %14 = sbr.rel target = $region3
  $region8: #{tpu_custom_call.1} parent=0 // loop_exit
    _

</llo_original>
